<compile_context>
chip_gen: v7x
topology: tpu7x:2x2x1
jax: 0.10.0
libtpu: 0.0.40
codegen_flags: <defaults>
</compile_context>

<pallas_src>
import numpy as np
import jax
import jax.numpy as jnp
from jax import lax
from jax.experimental import pallas as pl
from jax.experimental.pallas import tpu as pltpu

LANE = 128            # vreg lane width
ACC_ROWS = 8          # sublane height of accumulators / output partial blocks
MIN_TILE_ROWS = 16    # multiple of 16 so bf16 inputs tile cleanly too
MAX_TILE_ROWS = 2048  # (2048,128) f32 = 1 MiB/buffer; 2 inputs x 2 bufs = 4 MiB
                      # -> fits v5e's 16 MiB scoped-VMEM default with headroom.


# ----------------------------------------------------------------------------
# Pallas kernel factory: per-tile partial sums of squared diff and abs diff.
# Each grid step is independent (parallel); no scratch, no carried state.
# ----------------------------------------------------------------------------
def _make_diff_partial_kernel(tile_rows, n_rows_valid, unroll):
    n_chunks = tile_rows // ACC_ROWS
    # Masking is only needed if the last grid tile overhangs the array
    # (OOB rows of an edge block hold unchecked garbage on TPU).
    needs_mask = (n_rows_valid % tile_rows) != 0

    def kernel(p_ref, t_ref, sq_ref, l1_ref):
        base = pl.program_id(0) * tile_rows
        row_limit = n_rows_valid - base                       # scalar, per tile
        row_iota = lax.broadcasted_iota(jnp.int32, (ACC_ROWS, LANE), 0)

        def body(c, carry):
            sq_acc, l1_acc = carry
            r = pl.multiple_of(c * ACC_ROWS, ACC_ROWS)
            # Native-dtype loads, upcast to f32 in-kernel (free VALU convert).
            p = p_ref[pl.ds(r, ACC_ROWS), :].astype(jnp.float32)
            t = t_ref[pl.ds(r, ACC_ROWS), :].astype(jnp.float32)
            d = p - t
            if needs_mask:
                valid = (r + row_iota) < row_limit
                d = jnp.where(valid, d, 0.0)
            return sq_acc + d * d, l1_acc + jnp.abs(d)

        zero = jnp.zeros((ACC_ROWS, LANE), jnp.float32)
        sq_acc, l1_acc = lax.fori_loop(0, n_chunks, body, (zero, zero),
                                       unroll=unroll)
        sq_ref[...] = sq_acc                                  # (8,128) lane-dense
        l1_ref[...] = l1_acc

    return kernel


def _choose_tile_rows(rows):
    """Largest tile that fits comfortably, but >= 2 grid steps when possible
    so dimension_semantics=("parallel",) shards across v7x's two TCs."""
    rows16 = -(-rows // MIN_TILE_ROWS) * MIN_TILE_ROWS
    if rows16 <= 2 * MIN_TILE_ROWS:
        return MIN_TILE_ROWS
    half = -(-rows16 // 2)
    half16 = -(-half // MIN_TILE_ROWS) * MIN_TILE_ROWS
    return min(MAX_TILE_ROWS, half16)


def pallas_diff_sums(pred, tgt):
    """Returns (sum((pred-tgt)^2), sum(|pred-tgt|)) as f32 scalars."""
    assert pred.shape == tgt.shape
    n = int(np.prod(pred.shape))
    if n == 0:
        return jnp.float32(0.0), jnp.float32(0.0)

    # No dtype cast here: upcast happens in-kernel (halves HBM reads for bf16).
    p_flat = pred.reshape(-1)
    t_flat = tgt.reshape(-1)
    rem = n % LANE
    if rem:
        # Rare, tiny (<128 elem) pad so rows are lane-dense.  Both operands are
        # padded identically with zeros, so the diff on pads is exactly 0.
        pad = LANE - rem
        p_flat = jnp.pad(p_flat, (0, pad))
        t_flat = jnp.pad(t_flat, (0, pad))
    rows = p_flat.shape[0] // LANE
    p2 = p_flat.reshape(rows, LANE)
    t2 = t_flat.reshape(rows, LANE)

    tile_rows = _choose_tile_rows(rows)
    n_tiles = -(-rows // tile_rows)                   # cdiv; tail masked in-kernel
    unroll = max(1, min(8, tile_rows // ACC_ROWS))
    kernel = _make_diff_partial_kernel(tile_rows, rows, unroll)

    out_rows = n_tiles * ACC_ROWS
    cost = pl.CostEstimate(
        flops=5 * n, transcendentals=0,
        bytes_accessed=int(p2.size * p2.dtype.itemsize
                           + t2.size * t2.dtype.itemsize
                           + 2 * out_rows * LANE * 4))

    sq_part, l1_part = pl.pallas_call(
        kernel,
        out_shape=(jax.ShapeDtypeStruct((out_rows, LANE), jnp.float32),
                   jax.ShapeDtypeStruct((out_rows, LANE), jnp.float32)),
        grid_spec=pltpu.PrefetchScalarGridSpec(
            num_scalar_prefetch=0,
            grid=(n_tiles,),
            in_specs=[
                pl.BlockSpec((tile_rows, LANE), lambda i: (i, 0)),   # pred tiles
                pl.BlockSpec((tile_rows, LANE), lambda i: (i, 0)),   # target tiles
            ],
            out_specs=[
                pl.BlockSpec((ACC_ROWS, LANE), lambda i: (i, 0)),    # sq partials
                pl.BlockSpec((ACC_ROWS, LANE), lambda i: (i, 0)),    # l1 partials
            ],
        ),
        compiler_params=pltpu.CompilerParams(
            dimension_semantics=("parallel",)),       # shards across TCs on v7x
        cost_estimate=cost,
    )(p2, t2)

    # Tiny final tree-sum in JAX (numerically at least as good as a single
    # running scalar accumulator).
    return jnp.sum(sq_part), jnp.sum(l1_part)


# ----------------------------------------------------------------------------
# JAX glue: patch unpacking (equivalent of unpack_patch_imgs / unpack_patch_masks)
# ----------------------------------------------------------------------------
def unpack_patch_imgs(rgbs, patch_masks, bgcolor, targets, div_indices):
    # rgbs: (N_rays, 3), patch_masks: (N, H, W) bool, bgcolor: (3,), targets: (N,H,W,3)
    N, H, W = patch_masks.shape
    flat_mask = patch_masks.reshape(N, H * W)
    pos = jnp.cumsum(flat_mask.astype(jnp.int32), axis=1) - 1          # index within patch
    idx = pos + jnp.asarray(div_indices)[:-1, None]                    # global ray index
    idx = jnp.clip(idx, 0, rgbs.shape[0] - 1)
    gathered = rgbs[idx]                                               # (N, H*W, 3)
    bg = jnp.broadcast_to(bgcolor.astype(rgbs.dtype), targets.shape).reshape(N, H * W, 3)
    out = jnp.where(flat_mask[..., None], gathered, bg)
    return out.reshape(targets.shape)


def unpack_patch_masks(alpha, patch_masks, div_indices):
    # alpha: (N_rays,), patch_masks: (N, H, W) bool
    N, H, W = patch_masks.shape
    flat_mask = patch_masks.reshape(N, H * W)
    pos = jnp.cumsum(flat_mask.astype(jnp.int32), axis=1) - 1
    idx = pos + jnp.asarray(div_indices)[:-1, None]
    idx = jnp.clip(idx, 0, alpha.shape[0] - 1)
    gathered = alpha[idx]                                              # (N, H*W)
    out = jnp.where(flat_mask, gathered, 0.0)
    return out.reshape(N, H, W)


# ----------------------------------------------------------------------------
# Loss.forward (patch mode, loss_names = {'mse', 'l1', 'mask'})
# ----------------------------------------------------------------------------
def loss_forward(lossweights, net_output, patch_masks, bgcolor,
                 target_rgbs, target_alpha, div_indices):
    rgb = net_output['rgb']
    alpha = net_output['alpha']
    target_alpha = target_alpha.astype(jnp.float32)

    rgb_patch = unpack_patch_imgs(rgb, patch_masks, bgcolor, target_rgbs, div_indices)
    pred_alpha_patch = unpack_patch_masks(alpha, patch_masks, div_indices)

    # Dominant branch (N*H*W*3 elements) goes through the Pallas reduction.
    sum_sq_rgb, sum_l1_rgb = pallas_diff_sums(rgb_patch, target_rgbs)
    n_rgb = float(np.prod(target_rgbs.shape))

    losses = {}
    if 'mse' in lossweights:
        losses['mse'] = sum_sq_rgb / n_rgb
    if 'l1' in lossweights:
        losses['l1'] = sum_l1_rgb / n_rgb
    if 'mask' in lossweights:
        # Per perf review: the alpha tensor is tiny (1/3 of rgb element count),
        # so a second pallas_call's launch overhead dominates its work; a plain
        # fused XLA reduce is cheaper here.
        losses['mask'] = jnp.mean((pred_alpha_patch - target_alpha) ** 2)
    # TODO(synk): 'lpips' and 'ssim' losses are not implemented (no
    # self-contained Pallas equivalent of pretrained VGG / SSIM here).

    train_losses = [lossweights[k] * v for k, v in losses.items()
                    if k not in ('adv_D', 'tex_adv_D')]
    total = sum(train_losses)
    # Keep item values as traced scalars (jit-safe, no host sync); convert with
    # float() outside of any jit if desired.
    item_values = {k: lossweights[k] * v for k, v in losses.items()}
    return total, item_values


if __name__ == "__main__":
    N_patch, H, W = 2, 16, 16
    key = jax.random.PRNGKey(0)
    k1, k2, k3, k4, k5 = jax.random.split(key, 5)

    patch_masks = jax.random.uniform(k1, (N_patch, H, W)) > 0.5
    counts = np.asarray(jnp.sum(patch_masks.reshape(N_patch, -1), axis=1))
    div_indices = np.concatenate([[0], np.cumsum(counts)]).astype(np.int32)
    total_rays = int(div_indices[-1])

    rgb = jax.random.uniform(k2, (total_rays, 3), dtype=jnp.float32)
    alpha = jax.random.uniform(k3, (total_rays,), dtype=jnp.float32)
    target_rgbs = jax.random.uniform(k4, (N_patch, H, W, 3), dtype=jnp.float32)
    target_alpha = jax.random.uniform(k5, (N_patch, H, W)) > 0.5
    bgcolor = jnp.array([1.0, 1.0, 1.0], jnp.float32)

    lossweights = {'mse': 0.2, 'l1': 1.0, 'mask': 0.1}
    net_output = {'rgb': rgb, 'alpha': alpha}

    total, item_values = loss_forward(lossweights, net_output, patch_masks,
                                      bgcolor, target_rgbs, target_alpha,
                                      div_indices)
    total = jax.block_until_ready(total)
    item_values = {k: float(v) for k, v in item_values.items()}  # outside jit

    # reference check in plain JAX
    rgb_p = unpack_patch_imgs(rgb, patch_masks, bgcolor, target_rgbs, div_indices)
    a_p = unpack_patch_masks(alpha, patch_masks, div_indices)
    ref_mse = jnp.mean((rgb_p - target_rgbs) ** 2)
    ref_l1 = jnp.mean(jnp.abs(rgb_p - target_rgbs))
    ref_mask = jnp.mean((a_p - target_alpha.astype(jnp.float32)) ** 2)
    ref_total = 0.2 * ref_mse + 1.0 * ref_l1 + 0.1 * ref_mask
    assert np.allclose(float(total), float(ref_total), rtol=1e-5, atol=1e-6)
    assert np.allclose(item_values['mse'], float(0.2 * ref_mse), rtol=1e-5, atol=1e-6)
    assert np.allclose(item_values['l1'], float(1.0 * ref_l1), rtol=1e-5, atol=1e-6)
    assert np.allclose(item_values['mask'], float(0.1 * ref_mask), rtol=1e-5, atol=1e-6)

    print("KERNEL_OK")
</pallas_src>

<mosaic_0001>
module attributes {stable_mosaic.version = 11 : i64} {
  func.func @kernel(%arg0: i32, %arg1: memref<16x128xf32, #tpu.memory_space<vmem>>, %arg2: memref<16x128xf32, #tpu.memory_space<vmem>>, %arg3: memref<8x128xf32, #tpu.memory_space<vmem>>, %arg4: memref<8x128xf32, #tpu.memory_space<vmem>>) attributes {dimension_semantics = [#tpu.dimension_semantics<parallel>], iteration_bounds = array<i64: 1>, scalar_prefetch = 0 : i64, scratch_operands = 0 : i64, tpu.core_type = #tpu.core_type<tc>, window_params = [{transform_indices = @transform_0, window_bounds = array<i64: 16, 128>}, {transform_indices = @transform_1, window_bounds = array<i64: 16, 128>}, {transform_indices = @transform_2, window_bounds = array<i64: 8, 128>}, {transform_indices = @transform_3, window_bounds = array<i64: 8, 128>}]} {
    %c16_i32 = arith.constant 16 : i32
    %0 = arith.muli %arg0, %c16_i32 : i32
    %c12_i32 = arith.constant 12 : i32
    %1 = arith.subi %c12_i32, %0 : i32
    %2 = tpu.iota {dimensions = array<i32: 0>} : vector<8x128xi32>
    %cst = arith.constant 0.000000e+00 : f32
    %3 = vector.broadcast %cst : f32 to vector<8x128xf32>
    %c0_i32 = arith.constant 0 : i32
    %c8_i32 = arith.constant 8 : i32
    %4 = arith.muli %c0_i32, %c8_i32 : i32
    %5 = tpu.assume_multiple %4, 8 : i32
    %6 = arith.index_cast %5 : i32 to index
    %c0 = arith.constant 0 : index
    %7 = vector.load %arg1[%6, %c0] : memref<16x128xf32, #tpu.memory_space<vmem>>, vector<8x128xf32>
    %8 = arith.index_cast %5 : i32 to index
    %c0_0 = arith.constant 0 : index
    %9 = vector.load %arg2[%8, %c0_0] : memref<16x128xf32, #tpu.memory_space<vmem>>, vector<8x128xf32>
    %10 = arith.subf %7, %9 : vector<8x128xf32>
    %11 = vector.broadcast %5 : i32 to vector<8x128xi32>
    %12 = arith.addi %11, %2 : vector<8x128xi32>
    %13 = vector.broadcast %1 : i32 to vector<8x128xi32>
    %14 = arith.cmpi slt, %12, %13 : vector<8x128xi32>
    %cst_1 = arith.constant 0.000000e+00 : f32
    %15 = vector.broadcast %cst_1 : f32 to vector<8x128xf32>
    %16 = arith.select %14, %10, %15 : vector<8x128xi1>, vector<8x128xf32>
    %17 = arith.mulf %16, %16 : vector<8x128xf32>
    %18 = arith.addf %3, %17 : vector<8x128xf32>
    %19 = math.absf %16 : vector<8x128xf32>
    %20 = arith.addf %3, %19 : vector<8x128xf32>
    %c1_i32 = arith.constant 1 : i32
    %c8_i32_2 = arith.constant 8 : i32
    %21 = arith.muli %c1_i32, %c8_i32_2 : i32
    %22 = tpu.assume_multiple %21, 8 : i32
    %23 = arith.index_cast %22 : i32 to index
    %c0_3 = arith.constant 0 : index
    %24 = vector.load %arg1[%23, %c0_3] : memref<16x128xf32, #tpu.memory_space<vmem>>, vector<8x128xf32>
    %25 = arith.index_cast %22 : i32 to index
    %c0_4 = arith.constant 0 : index
    %26 = vector.load %arg2[%25, %c0_4] : memref<16x128xf32, #tpu.memory_space<vmem>>, vector<8x128xf32>
    %27 = arith.subf %24, %26 : vector<8x128xf32>
    %28 = vector.broadcast %22 : i32 to vector<8x128xi32>
    %29 = arith.addi %28, %2 : vector<8x128xi32>
    %30 = vector.broadcast %1 : i32 to vector<8x128xi32>
    %31 = arith.cmpi slt, %29, %30 : vector<8x128xi32>
    %cst_5 = arith.constant 0.000000e+00 : f32
    %32 = vector.broadcast %cst_5 : f32 to vector<8x128xf32>
    %33 = arith.select %31, %27, %32 : vector<8x128xi1>, vector<8x128xf32>
    %34 = arith.mulf %33, %33 : vector<8x128xf32>
    %35 = arith.addf %18, %34 : vector<8x128xf32>
    %36 = math.absf %33 : vector<8x128xf32>
    %37 = arith.addf %20, %36 : vector<8x128xf32>
    %c2_i32 = arith.constant 2 : i32
    %c0_6 = arith.constant 0 : index
    %c0_7 = arith.constant 0 : index
    %38 = vector.load %arg3[%c0_6, %c0_7] : memref<8x128xf32, #tpu.memory_space<vmem>>, vector<8x128xf32>
    tpu.vector_store %arg3[%c0_6, %c0_7], %35 {strides = array<i32>} : memref<8x128xf32, #tpu.memory_space<vmem>>, vector<8x128xf32>,
    %c0_8 = arith.constant 0 : index
    %c0_9 = arith.constant 0 : index
    %39 = vector.load %arg4[%c0_8, %c0_9] : memref<8x128xf32, #tpu.memory_space<vmem>>, vector<8x128xf32>
    tpu.vector_store %arg4[%c0_8, %c0_9], %37 {strides = array<i32>} : memref<8x128xf32, #tpu.memory_space<vmem>>, vector<8x128xf32>,
    return
  }
  func.func @transform_0(%arg0: i32) -> (i32, i32) {
    %c0_i32 = arith.constant 0 : i32
    %c0_i32_0 = arith.constant 0 : i32
    return %arg0, %c0_i32 : i32, i32
  }
  func.func @transform_1(%arg0: i32) -> (i32, i32) {
    %c0_i32 = arith.constant 0 : i32
    %c0_i32_0 = arith.constant 0 : i32
    return %arg0, %c0_i32 : i32, i32
  }
  func.func @transform_2(%arg0: i32) -> (i32, i32) {
    %c0_i32 = arith.constant 0 : i32
    %c0_i32_0 = arith.constant 0 : i32
    return %arg0, %c0_i32 : i32, i32
  }
  func.func @transform_3(%arg0: i32) -> (i32, i32) {
    %c0_i32 = arith.constant 0 : i32
    %c0_i32_0 = arith.constant 0 : i32
    return %arg0, %c0_i32 : i32, i32
  }
}

</mosaic_0001>

<llo_original>
// kernel: tpu_custom_call.1
$region0: #{tpu_custom_call.1}
  #allocation0 [shape = 'u32[]', space=smem, size = 0x4, offset = 0x4, fixed_abs, tag = 'smem constant byte address 0x4 - core index']
  #allocation1 [shape = 'u32[144,128]{1,0:T(1,128)}', space=vmem, size = 0x12000, scoped, tag = 'internal scratch']
  %s0 = inlined_call_operand.hbm [shape: f32[12,128], index: 0, kind: input, shape index: {}]
  %s1 = inlined_call_operand.hbm [shape: f32[12,128], index: 1, kind: input, shape index: {}]
  %s2 = inlined_call_operand.hbm [shape: f32[8,128], index: 2, kind: output, shape index: {0}]
  %s3 = inlined_call_operand.hbm [shape: f32[8,128], index: 3, kind: output, shape index: {1}]
  %4 = xla_tuple %s2, %s3
  %s5 = sld [smem:[#allocation0]]
  $region34: #{tpu_custom_call.1} parent=0
    _
  %s7 = ssub.s32 1, %s5
  %s8 = scalar_select 0, %s7, %s5
  $region1: #{tpu_custom_call.1} parent=0
    #allocation2 [shape = 'u8[8192]{0}', space=vmem, size = 0x2000, scoped, tag = 'input window, operand 0, single buffered']
    #allocation3 [shape = 's32[1]{0}', space=sflag, size = 0x4, scoped, tag = 'scoped memory for tpu_custom_call.1']
    #allocation4 [shape = 's32[1]{0}', space=sflag, size = 0x4, scoped, tag = 'scoped memory for tpu_custom_call.1']
    #allocation5 [shape = 'u8[8192]{0}', space=vmem, size = 0x2000, scoped, tag = 'input window, operand 1, single buffered']
    #allocation6 [shape = 's32[1]{0}', space=sflag, size = 0x4, scoped, tag = 'scoped memory for tpu_custom_call.1']
    #allocation7 [shape = 'u8[4096]{0}', space=vmem, size = 0x1000, scoped, tag = 'output window, operand 0, single buffered']
    #allocation8 [shape = 'u8[4096]{0}', space=vmem, size = 0x1000, scoped, tag = 'output window, operand 1, single buffered']
    #allocation9 [shape = 's32[1]{0}', space=sflag, size = 0x4, scoped, tag = 'scoped memory for tpu_custom_call.1']
    %9 = vsyncpa [#allocation3], 0
    %10 = vsyncpa [#allocation6], 0
    %11 = vsyncpa [#allocation4], 0
    %12 = vsyncpa [#allocation9], 0
    // Predicated region
    $region2: #{tpu_custom_call.1} parent=1 // pred_check
      _
    $region3: #{tpu_custom_call.1} parent=1 // pred_check_branch
      %14 = sbr.rel (0) target = $region5
    $region4: #{tpu_custom_call.1} parent=1 // pred_region
      %s16 = ssub.s32 256, 256
      %17 = vsyncadd [#allocation3], %s16
      %s18 = sshll.u32 [#allocation2], 4
      %s19 = int_to_ptr.vmem [resolvable:$true] %s18
      %24 = dma.hbm_to_vmem [thread:$0]  %s0, 256, %s19, [#allocation3], 128, 128, 8
    $region5: #{tpu_custom_call.1} parent=1 // pred_fallthru
      _
    // Predicated region
    $region6: #{tpu_custom_call.1} parent=1 // pred_check
      _
    $region7: #{tpu_custom_call.1} parent=1 // pred_check_branch
      %26 = sbr.rel (0) target = $region9
    $region8: #{tpu_custom_call.1} parent=1 // pred_region
      %s28 = ssub.s32 256, 256
      %29 = vsyncadd [#allocation6], %s28
      %s30 = sshll.u32 [#allocation5], 4
      %s31 = int_to_ptr.vmem [resolvable:$true] %s30
      %36 = dma.hbm_to_vmem [thread:$0]  %s1, 256, %s31, [#allocation6], 128, 128, 8
    $region9: #{tpu_custom_call.1} parent=1 // pred_fallthru
      _
    // Predicated region
    $region10: #{tpu_custom_call.1} parent=1 // pred_check
      _
    $region11: #{tpu_custom_call.1} parent=1 // pred_check_branch
      %38 = sbr.rel (0) target = $region13
    $region12: #{tpu_custom_call.1} parent=1 // pred_region
      %39 = dma.done [#allocation3], 256
    $region13: #{tpu_custom_call.1} parent=1 // pred_fallthru
      _
    // Predicated region
    $region14: #{tpu_custom_call.1} parent=1 // pred_check
      _
    $region15: #{tpu_custom_call.1} parent=1 // pred_check_branch
      %41 = sbr.rel (0) target = $region17
    $region16: #{tpu_custom_call.1} parent=1 // pred_region
      %42 = dma.done [#allocation6], 256
    $region17: #{tpu_custom_call.1} parent=1 // pred_fallthru
      _
    %s43 = smul.u32 0, 16
    %s44 = ssub.s32 12, %s43
    %v45 = vlaneseq
    %v46 = vshrl.u32 %v45, 7
    %v47 = vld [vmem:[#allocation2] sm:$0xff]
    %v48 = vld [vmem:[#allocation5] sm:$0xff]
    %v49 = vsub.f32 %v47, %v48
    %v50 = vstv 0
    %v51 = vadd.s32 %v50, %v46
    %v52 = vstv %s44
    %vm53 = vcmp.lt.s32.totalorder %v51, %v52
    %v54 = vsel %vm53, %v49, 0.0
    %v55 = vmul.f32 %v54, %v54
    %v56 = vadd.f32 %v55, 0.0
    %v57 = vand.u32 2147483647, %v54
    %v58 = vadd.f32 %v57, 0.0
    %s59 = scalar_lea.vmem [#allocation2], 8
    %v60 = vld [vmem:[%s59] sm:$0xff]
    %s61 = scalar_lea.vmem [#allocation5], 8
    %v62 = vld [vmem:[%s61] sm:$0xff]
    %v63 = vsub.f32 %v60, %v62
    %v64 = vstv 8
    %v65 = vadd.s32 %v64, %v46
    %vm66 = vcmp.lt.s32.totalorder %v65, %v52
    %v67 = vsel %vm66, %v63, 0.0
    %v68 = vmul.f32 %v67, %v67
    %v69 = vadd.f32 %v56, %v68
    %v70 = vand.u32 2147483647, %v67
    %v71 = vadd.f32 %v58, %v70
    %72 = vst [vmem:[#allocation7] sm:$0xff] %v69
    %73 = vst [vmem:[#allocation8] sm:$0xff] %v71
    // Predicated region
    $region18: #{tpu_custom_call.1} parent=1 // pred_check
      _
    $region19: #{tpu_custom_call.1} parent=1 // pred_check_branch
      %75 = sbr.rel (0) target = $region21
    $region20: #{tpu_custom_call.1} parent=1 // pred_region
      %s77 = ssub.s32 128, 128
      %78 = vsyncadd [#allocation4], %s77
      %s80 = sshll.u32 [#allocation7], 4
      %s81 = int_to_ptr.vmem [resolvable:$true] %s80
      %83 = dma.vmem_to_hbm [thread:$0]  %s81, 128, %s2, [#allocation4]
    $region21: #{tpu_custom_call.1} parent=1 // pred_fallthru
      _
    // Predicated region
    $region22: #{tpu_custom_call.1} parent=1 // pred_check
      _
    $region23: #{tpu_custom_call.1} parent=1 // pred_check_branch
      %85 = sbr.rel (0) target = $region25
    $region24: #{tpu_custom_call.1} parent=1 // pred_region
      %s87 = ssub.s32 128, 128
      %88 = vsyncadd [#allocation9], %s87
      %s90 = sshll.u32 [#allocation8], 4
      %s91 = int_to_ptr.vmem [resolvable:$true] %s90
      %93 = dma.vmem_to_hbm [thread:$0]  %s91, 128, %s3, [#allocation9]
    $region25: #{tpu_custom_call.1} parent=1 // pred_fallthru
      _
    // Predicated region
    $region26: #{tpu_custom_call.1} parent=1 // pred_check
      _
    $region27: #{tpu_custom_call.1} parent=1 // pred_check_branch
      %95 = sbr.rel (0) target = $region29
    $region28: #{tpu_custom_call.1} parent=1 // pred_region
      %96 = dma.done [#allocation4], 128
    $region29: #{tpu_custom_call.1} parent=1 // pred_fallthru
      _
    // Predicated region
    $region30: #{tpu_custom_call.1} parent=1 // pred_check
      _
    $region31: #{tpu_custom_call.1} parent=1 // pred_check_branch
      %98 = sbr.rel (0) target = $region33
    $region32: #{tpu_custom_call.1} parent=1 // pred_region
      %99 = dma.done [#allocation9], 128
    $region33: #{tpu_custom_call.1} parent=1 // pred_fallthru
      _
    %100 = vsyncpa [#allocation3], 1
    %101 = vsyncpa [#allocation6], 1
    %102 = vsyncpa [#allocation4], 1
    %103 = vsyncpa [#allocation9], 1

</llo_original>
